<compile_context>
chip_gen: v7x
topology: tpu7x:2x2x1
jax: 0.10.0
libtpu: 0.0.40
codegen_flags: <defaults>
</compile_context>

<pallas_src>
import functools

import numpy as np

import jax
import jax.numpy as jnp
from jax.experimental import pallas as pl
from jax.experimental.pallas import tpu as pltpu


def fire_kernel(x_ref, wsq_ref, bsq_ref, wexp_ref, bexp_ref, mask_ref,
                out_ref, im2col_ref, *, H, W):
    # x_ref:    (1, Cin, HW) f32       wsq_ref: (Cs, Cin) bf16
    # wexp_ref: (C1+C3, 9*Cs) bf16     mask_ref: (9, HW) f32
    # biases:   (C, 1) f32             im2col_ref: (9*Cs, HW) f32 VMEM scratch
    HW = H * W
    Cs = wsq_ref.shape[0]

    # ---- squeeze 1x1 conv + ReLU (bf16 MXU, f32 accumulate/elementwise) ----
    x = x_ref[0].astype(jnp.bfloat16)                         # (Cin, HW)
    s = jnp.dot(wsq_ref[...], x, preferred_element_type=jnp.float32)
    s = jnp.maximum(s + bsq_ref[...], 0.0)                    # (Cs, HW) f32

    # ---- im2col for the 3x3 taps -------------------------------------------
    # Shifted squeeze maps via XLU lane rotation; zero padding applied with a
    # precomputed 0/1 boundary mask (one broadcast multiply per tap).  Each
    # tap is written straight into the f32 VMEM scratch (sublane-aligned,
    # Cs-row blocks), so only one tap is live in vregs at a time.
    mask = mask_ref[...]                                      # (9, HW)
    for kh in range(3):
        for kw in range(3):
            dh, dw = kh - 1, kw - 1
            t = kh * 3 + kw
            flat_shift = dh * W + dw
            if flat_shift == 0:
                tap = s                                        # centre tap: mask is all ones
            else:
                tap = pltpu.roll(s, shift=(-flat_shift) % HW, axis=1)
                tap = tap * mask[t:t + 1, :]
            im2col_ref[t * Cs:(t + 1) * Cs, :] = tap

    # ---- fused expand1x1 + expand3x3 + ReLU --------------------------------
    # One (C1+C3, 9*Cs) @ (9*Cs, HW) MXU call (expand1x1 lives in the centre
    # tap columns of wexp), then one full unmasked lane-dense store.
    e = jnp.dot(wexp_ref[...], im2col_ref[...].astype(jnp.bfloat16),
                preferred_element_type=jnp.float32)
    e = jnp.maximum(e + bexp_ref[...], 0.0)                   # (C1+C3, HW)
    out_ref[0] = e.astype(out_ref.dtype)


def fire_pallas(x_nchw, wsq, bsq, w1, b1, w3, b3):
    """Fire forward.

    x_nchw: (N, Cin, H, W)
    wsq: (Cs, Cin),      bsq: (Cs,)    -- squeeze 1x1   (PyTorch OI layout)
    w1:  (C1, Cs),       b1:  (C1,)    -- expand1x1     (PyTorch OI layout)
    w3:  (C3, Cs, 3, 3), b3:  (C3,)    -- expand3x3     (PyTorch OIHW layout)
    Returns (N, C1 + C3, H, W), matching torch.cat([e1, e3], dim=1).
    """
    N, Cin, H, W = x_nchw.shape
    Cs = wsq.shape[0]
    C1 = w1.shape[0]
    C3 = w3.shape[0]
    HW = H * W

    x_flat = x_nchw.reshape(N, Cin, HW)                       # free reshape

    # Fused expand weight (bf16): rows [0:C1] = expand1x1 embedded in the
    # centre-tap column block; rows [C1:] = expand3x3 reordered tap-major,
    # channel-minor to match the in-kernel im2col row order.
    w3t = jnp.transpose(w3, (0, 2, 3, 1)).reshape(C3, 9 * Cs)
    w1f = jnp.zeros((C1, 9 * Cs), w1.dtype).at[:, 4 * Cs:5 * Cs].set(w1)
    w_exp = jnp.concatenate([w1f, w3t], axis=0).astype(jnp.bfloat16)
    b_exp = jnp.concatenate([b1, b3], axis=0).reshape(C1 + C3, 1)

    wsq_b = wsq.astype(jnp.bfloat16)
    bsq_c = bsq.reshape(Cs, 1)

    # Precomputed zero-padding boundary masks for the 9 taps (host constant).
    pos = np.arange(HW)
    row, col = pos // W, pos % W
    mask_np = np.zeros((9, HW), np.float32)
    for kh in range(3):
        for kw in range(3):
            dh, dw = kh - 1, kw - 1
            valid = ((row + dh >= 0) & (row + dh < H) &
                     (col + dw >= 0) & (col + dw < W))
            mask_np[kh * 3 + kw] = valid.astype(np.float32)
    mask = jnp.asarray(mask_np)

    flops = 2 * N * HW * (Cs * Cin + (C1 + C3) * 9 * Cs)
    bytes_accessed = (x_flat.size * x_flat.dtype.itemsize
                      + wsq_b.size * 2 + w_exp.size * 2
                      + (Cs + C1 + C3) * 4 + mask.size * 4
                      + N * (C1 + C3) * HW * x_nchw.dtype.itemsize)

    out = pl.pallas_call(
        functools.partial(fire_kernel, H=H, W=W),
        out_shape=jax.ShapeDtypeStruct((N, C1 + C3, HW), x_nchw.dtype),
        grid_spec=pltpu.PrefetchScalarGridSpec(
            num_scalar_prefetch=0,
            grid=(N,),
            in_specs=[
                pl.BlockSpec((1, Cin, HW), lambda n: (n, 0, 0)),
                pl.BlockSpec((Cs, Cin), lambda n: (0, 0)),
                pl.BlockSpec((Cs, 1), lambda n: (0, 0)),
                pl.BlockSpec((C1 + C3, 9 * Cs), lambda n: (0, 0)),
                pl.BlockSpec((C1 + C3, 1), lambda n: (0, 0)),
                pl.BlockSpec((9, HW), lambda n: (0, 0)),
            ],
            out_specs=pl.BlockSpec((1, C1 + C3, HW), lambda n: (n, 0, 0)),
            scratch_shapes=[pltpu.VMEM((9 * Cs, HW), jnp.float32)],
        ),
        compiler_params=pltpu.CompilerParams(
            dimension_semantics=("parallel",)),
        cost_estimate=pl.CostEstimate(
            flops=flops, transcendentals=0, bytes_accessed=bytes_accessed),
    )(x_flat, wsq_b, bsq_c, w_exp, b_exp, mask)

    return out.reshape(N, C1 + C3, H, W)                      # free reshape


def fire_reference(x, wsq, bsq, w1, b1, w3, b3):
    """Pure-JAX reference in NCHW / OIHW (PyTorch convention)."""
    dn = ("NCHW", "OIHW", "NCHW")
    s = jax.nn.relu(jax.lax.conv_general_dilated(
        x, wsq[:, :, None, None], (1, 1), "VALID", dimension_numbers=dn)
        + bsq[None, :, None, None])
    e1 = jax.nn.relu(jax.lax.conv_general_dilated(
        s, w1[:, :, None, None], (1, 1), "VALID", dimension_numbers=dn)
        + b1[None, :, None, None])
    e3 = jax.nn.relu(jax.lax.conv_general_dilated(
        s, w3, (1, 1), [(1, 1), (1, 1)], dimension_numbers=dn)
        + b3[None, :, None, None])
    return jnp.concatenate([e1, e3], axis=1)


if __name__ == "__main__":
    # Fire(in_channels=4, squeeze_channels=8, expand1x1=16, expand3x3=16)
    N, Cin, H, W = 2, 4, 16, 16
    Cs, C1, C3 = 8, 16, 16

    key = jax.random.PRNGKey(0)
    kx, k1, k2, k3, k4, k5, k6 = jax.random.split(key, 7)

    x = jax.random.normal(kx, (N, Cin, H, W), dtype=jnp.float32)

    # Parameters in PyTorch Conv2d layouts (OI / OIHW).
    wsq = jax.random.normal(k1, (Cs, Cin), dtype=jnp.float32) * 0.3
    bsq = jax.random.normal(k2, (Cs,), dtype=jnp.float32) * 0.1
    w1 = jax.random.normal(k3, (C1, Cs), dtype=jnp.float32) * 0.3
    b1 = jax.random.normal(k4, (C1,), dtype=jnp.float32) * 0.1
    w3 = jax.random.normal(k5, (C3, Cs, 3, 3), dtype=jnp.float32) * 0.1
    b3 = jax.random.normal(k6, (C3,), dtype=jnp.float32) * 0.1

    out = fire_pallas(x, wsq, bsq, w1, b1, w3, b3)
    out = jax.block_until_ready(out)

    ref = fire_reference(x, wsq, bsq, w1, b1, w3, b3)
    assert out.shape == (N, C1 + C3, H, W), out.shape
    # bf16 MXU operands -> loosened tolerance vs. the f32 conv reference.
    assert jnp.allclose(out, ref, atol=3e-2, rtol=3e-2), \
        float(jnp.max(jnp.abs(out - ref)))

    print("KERNEL_OK")
</pallas_src>

<mosaic_0001>
module attributes {stable_mosaic.version = 11 : i64} {
  func.func @fire_kernel(%arg0: i32, %arg1: memref<1x4x256xf32, #tpu.memory_space<vmem>>, %arg2: memref<8x4xbf16, #tpu.memory_space<vmem>>, %arg3: memref<8x1xf32, #tpu.memory_space<vmem>>, %arg4: memref<32x72xbf16, #tpu.memory_space<vmem>>, %arg5: memref<32x1xf32, #tpu.memory_space<vmem>>, %arg6: memref<9x256xf32, #tpu.memory_space<vmem>>, %arg7: memref<1x32x256xf32, #tpu.memory_space<vmem>>, %arg8: memref<72x256xf32, #tpu.memory_space<vmem>>) attributes {dimension_semantics = [#tpu.dimension_semantics<parallel>], iteration_bounds = array<i64: 2>, scalar_prefetch = 0 : i64, scratch_operands = 1 : i64, tpu.core_type = #tpu.core_type<tc>, window_params = [{transform_indices = @transform_0, window_bounds = array<i64: 1, 4, 256>}, {pipeline_mode = #tpu.pipeline_mode<synchronous>, transform_indices = @transform_1, window_bounds = array<i64: 8, 4>}, {pipeline_mode = #tpu.pipeline_mode<synchronous>, transform_indices = @transform_2, window_bounds = array<i64: 8, 1>}, {pipeline_mode = #tpu.pipeline_mode<synchronous>, transform_indices = @transform_3, window_bounds = array<i64: 32, 72>}, {pipeline_mode = #tpu.pipeline_mode<synchronous>, transform_indices = @transform_4, window_bounds = array<i64: 32, 1>}, {pipeline_mode = #tpu.pipeline_mode<synchronous>, transform_indices = @transform_5, window_bounds = array<i64: 9, 256>}, {transform_indices = @transform_6, window_bounds = array<i64: 1, 32, 256>}]} {
    %c0 = arith.constant 0 : index
    %c0_0 = arith.constant 0 : index
    %c0_1 = arith.constant 0 : index
    %0 = vector.load %arg1[%c0, %c0_0, %c0_1] : memref<1x4x256xf32, #tpu.memory_space<vmem>>, vector<1x4x256xf32>
    %1 = vector.shape_cast %0 : vector<1x4x256xf32> to vector<4x256xf32>
    %2 = arith.truncf %1 : vector<4x256xf32> to vector<4x256xbf16>
    %c0_2 = arith.constant 0 : index
    %c0_3 = arith.constant 0 : index
    %3 = vector.load %arg2[%c0_2, %c0_3] : memref<8x4xbf16, #tpu.memory_space<vmem>>, vector<8x4xbf16>
    %cst = arith.constant dense<0.000000e+00> : vector<8x256xf32>
    %4 = tpu.matmul %3, %2, %cst {dimension_numbers = #tpu.dot_dimension_numbers<[1], [0], [0], [1], [0, 0, 1, 1], [], []>} : vector<8x4xbf16>, vector<4x256xbf16>, vector<8x256xf32> -> vector<8x256xf32>
    %c0_4 = arith.constant 0 : index
    %c0_5 = arith.constant 0 : index
    %5 = vector.load %arg3[%c0_4, %c0_5] : memref<8x1xf32, #tpu.memory_space<vmem>>, vector<8x1xf32>
    %6 = vector.broadcast %5 : vector<8x1xf32> to vector<8x256xf32>
    %7 = arith.addf %4, %6 : vector<8x256xf32>
    %cst_6 = arith.constant 0.000000e+00 : f32
    %8 = vector.broadcast %cst_6 : f32 to vector<8x256xf32>
    %9 = arith.maximumf %7, %8 : vector<8x256xf32>
    %c0_7 = arith.constant 0 : index
    %c0_8 = arith.constant 0 : index
    %10 = vector.load %arg6[%c0_7, %c0_8] : memref<9x256xf32, #tpu.memory_space<vmem>>, vector<9x256xf32>
    %c17_i32 = arith.constant 17 : i32
    %11 = tpu.dynamic_rotate %9 by %c17_i32 dim 1 : vector<8x256xf32>, i32 -> vector<8x256xf32>
    %12 = vector.extract_strided_slice %10 {offsets = [0, 0], sizes = [1, 256], strides = [1, 1]} : vector<9x256xf32> to vector<1x256xf32>
    %13 = vector.broadcast %12 : vector<1x256xf32> to vector<8x256xf32>
    %14 = arith.mulf %11, %13 : vector<8x256xf32>
    %c0_9 = arith.constant 0 : index
    %c0_10 = arith.constant 0 : index
    %15 = vector.load %arg8[%c0_9, %c0_10] : memref<72x256xf32, #tpu.memory_space<vmem>>, vector<8x256xf32>
    tpu.vector_store %arg8[%c0_9, %c0_10], %14 {strides = array<i32>} : memref<72x256xf32, #tpu.memory_space<vmem>>, vector<8x256xf32>,
    %c16_i32 = arith.constant 16 : i32
    %16 = tpu.dynamic_rotate %9 by %c16_i32 dim 1 : vector<8x256xf32>, i32 -> vector<8x256xf32>
    %17 = vector.extract_strided_slice %10 {offsets = [1, 0], sizes = [1, 256], strides = [1, 1]} : vector<9x256xf32> to vector<1x256xf32>
    %18 = vector.broadcast %17 : vector<1x256xf32> to vector<8x256xf32>
    %19 = arith.mulf %16, %18 : vector<8x256xf32>
    %c8 = arith.constant 8 : index
    %c0_11 = arith.constant 0 : index
    %20 = vector.load %arg8[%c8, %c0_11] : memref<72x256xf32, #tpu.memory_space<vmem>>, vector<8x256xf32>
    tpu.vector_store %arg8[%c8, %c0_11], %19 {strides = array<i32>} : memref<72x256xf32, #tpu.memory_space<vmem>>, vector<8x256xf32>,
    %c15_i32 = arith.constant 15 : i32
    %21 = tpu.dynamic_rotate %9 by %c15_i32 dim 1 : vector<8x256xf32>, i32 -> vector<8x256xf32>
    %22 = vector.extract_strided_slice %10 {offsets = [2, 0], sizes = [1, 256], strides = [1, 1]} : vector<9x256xf32> to vector<1x256xf32>
    %23 = vector.broadcast %22 : vector<1x256xf32> to vector<8x256xf32>
    %24 = arith.mulf %21, %23 : vector<8x256xf32>
    %c16 = arith.constant 16 : index
    %c0_12 = arith.constant 0 : index
    %25 = vector.load %arg8[%c16, %c0_12] : memref<72x256xf32, #tpu.memory_space<vmem>>, vector<8x256xf32>
    tpu.vector_store %arg8[%c16, %c0_12], %24 {strides = array<i32>} : memref<72x256xf32, #tpu.memory_space<vmem>>, vector<8x256xf32>,
    %c1_i32 = arith.constant 1 : i32
    %26 = tpu.dynamic_rotate %9 by %c1_i32 dim 1 : vector<8x256xf32>, i32 -> vector<8x256xf32>
    %27 = vector.extract_strided_slice %10 {offsets = [3, 0], sizes = [1, 256], strides = [1, 1]} : vector<9x256xf32> to vector<1x256xf32>
    %28 = vector.broadcast %27 : vector<1x256xf32> to vector<8x256xf32>
    %29 = arith.mulf %26, %28 : vector<8x256xf32>
    %c24 = arith.constant 24 : index
    %c0_13 = arith.constant 0 : index
    %30 = vector.load %arg8[%c24, %c0_13] : memref<72x256xf32, #tpu.memory_space<vmem>>, vector<8x256xf32>
    tpu.vector_store %arg8[%c24, %c0_13], %29 {strides = array<i32>} : memref<72x256xf32, #tpu.memory_space<vmem>>, vector<8x256xf32>,
    %c32 = arith.constant 32 : index
    %c0_14 = arith.constant 0 : index
    %31 = vector.load %arg8[%c32, %c0_14] : memref<72x256xf32, #tpu.memory_space<vmem>>, vector<8x256xf32>
    tpu.vector_store %arg8[%c32, %c0_14], %9 {strides = array<i32>} : memref<72x256xf32, #tpu.memory_space<vmem>>, vector<8x256xf32>,
    %c255_i32 = arith.constant 255 : i32
    %32 = tpu.dynamic_rotate %9 by %c255_i32 dim 1 : vector<8x256xf32>, i32 -> vector<8x256xf32>
    %33 = vector.extract_strided_slice %10 {offsets = [5, 0], sizes = [1, 256], strides = [1, 1]} : vector<9x256xf32> to vector<1x256xf32>
    %34 = vector.broadcast %33 : vector<1x256xf32> to vector<8x256xf32>
    %35 = arith.mulf %32, %34 : vector<8x256xf32>
    %c40 = arith.constant 40 : index
    %c0_15 = arith.constant 0 : index
    %36 = vector.load %arg8[%c40, %c0_15] : memref<72x256xf32, #tpu.memory_space<vmem>>, vector<8x256xf32>
    tpu.vector_store %arg8[%c40, %c0_15], %35 {strides = array<i32>} : memref<72x256xf32, #tpu.memory_space<vmem>>, vector<8x256xf32>,
    %c241_i32 = arith.constant 241 : i32
    %37 = tpu.dynamic_rotate %9 by %c241_i32 dim 1 : vector<8x256xf32>, i32 -> vector<8x256xf32>
    %38 = vector.extract_strided_slice %10 {offsets = [6, 0], sizes = [1, 256], strides = [1, 1]} : vector<9x256xf32> to vector<1x256xf32>
    %39 = vector.broadcast %38 : vector<1x256xf32> to vector<8x256xf32>
    %40 = arith.mulf %37, %39 : vector<8x256xf32>
    %c48 = arith.constant 48 : index
    %c0_16 = arith.constant 0 : index
    %41 = vector.load %arg8[%c48, %c0_16] : memref<72x256xf32, #tpu.memory_space<vmem>>, vector<8x256xf32>
    tpu.vector_store %arg8[%c48, %c0_16], %40 {strides = array<i32>} : memref<72x256xf32, #tpu.memory_space<vmem>>, vector<8x256xf32>,
    %c240_i32 = arith.constant 240 : i32
    %42 = tpu.dynamic_rotate %9 by %c240_i32 dim 1 : vector<8x256xf32>, i32 -> vector<8x256xf32>
    %43 = vector.extract_strided_slice %10 {offsets = [7, 0], sizes = [1, 256], strides = [1, 1]} : vector<9x256xf32> to vector<1x256xf32>
    %44 = vector.broadcast %43 : vector<1x256xf32> to vector<8x256xf32>
    %45 = arith.mulf %42, %44 : vector<8x256xf32>
    %c56 = arith.constant 56 : index
    %c0_17 = arith.constant 0 : index
    %46 = vector.load %arg8[%c56, %c0_17] : memref<72x256xf32, #tpu.memory_space<vmem>>, vector<8x256xf32>
    tpu.vector_store %arg8[%c56, %c0_17], %45 {strides = array<i32>} : memref<72x256xf32, #tpu.memory_space<vmem>>, vector<8x256xf32>,
    %c239_i32 = arith.constant 239 : i32
    %47 = tpu.dynamic_rotate %9 by %c239_i32 dim 1 : vector<8x256xf32>, i32 -> vector<8x256xf32>
    %48 = vector.extract_strided_slice %10 {offsets = [8, 0], sizes = [1, 256], strides = [1, 1]} : vector<9x256xf32> to vector<1x256xf32>
    %49 = vector.broadcast %48 : vector<1x256xf32> to vector<8x256xf32>
    %50 = arith.mulf %47, %49 : vector<8x256xf32>
    %c64 = arith.constant 64 : index
    %c0_18 = arith.constant 0 : index
    %51 = vector.load %arg8[%c64, %c0_18] : memref<72x256xf32, #tpu.memory_space<vmem>>, vector<8x256xf32>
    tpu.vector_store %arg8[%c64, %c0_18], %50 {strides = array<i32>} : memref<72x256xf32, #tpu.memory_space<vmem>>, vector<8x256xf32>,
    %c0_19 = arith.constant 0 : index
    %c0_20 = arith.constant 0 : index
    %52 = vector.load %arg4[%c0_19, %c0_20] : memref<32x72xbf16, #tpu.memory_space<vmem>>, vector<32x72xbf16>
    %c0_21 = arith.constant 0 : index
    %c0_22 = arith.constant 0 : index
    %53 = vector.load %arg8[%c0_21, %c0_22] : memref<72x256xf32, #tpu.memory_space<vmem>>, vector<72x256xf32>
    %54 = arith.truncf %53 : vector<72x256xf32> to vector<72x256xbf16>
    %cst_23 = arith.constant dense<0.000000e+00> : vector<32x256xf32>
    %55 = tpu.matmul %52, %54, %cst_23 {dimension_numbers = #tpu.dot_dimension_numbers<[1], [0], [0], [1], [0, 0, 1, 1], [], []>} : vector<32x72xbf16>, vector<72x256xbf16>, vector<32x256xf32> -> vector<32x256xf32>
    %c0_24 = arith.constant 0 : index
    %c0_25 = arith.constant 0 : index
    %56 = vector.load %arg5[%c0_24, %c0_25] : memref<32x1xf32, #tpu.memory_space<vmem>>, vector<32x1xf32>
    %57 = vector.broadcast %56 : vector<32x1xf32> to vector<32x256xf32>
    %58 = arith.addf %55, %57 : vector<32x256xf32>
    %cst_26 = arith.constant 0.000000e+00 : f32
    %59 = vector.broadcast %cst_26 : f32 to vector<32x256xf32>
    %60 = arith.maximumf %58, %59 : vector<32x256xf32>
    %c0_27 = arith.constant 0 : index
    %c0_28 = arith.constant 0 : index
    %c0_29 = arith.constant 0 : index
    %61 = vector.load %arg7[%c0_27, %c0_28, %c0_29] : memref<1x32x256xf32, #tpu.memory_space<vmem>>, vector<1x32x256xf32>
    %62 = vector.shape_cast %61 : vector<1x32x256xf32> to vector<32x256xf32>
    %63 = vector.shape_cast %60 : vector<32x256xf32> to vector<1x32x256xf32>
    tpu.vector_store %arg7[%c0_27, %c0_28, %c0_29], %63 {strides = array<i32>} : memref<1x32x256xf32, #tpu.memory_space<vmem>>, vector<1x32x256xf32>,
    return
  }
  func.func @transform_0(%arg0: i32) -> (i32, i32, i32) {
    %c0_i32 = arith.constant 0 : i32
    %c0_i32_0 = arith.constant 0 : i32
    %c0_i32_1 = arith.constant 0 : i32
    return %arg0, %c0_i32, %c0_i32_0 : i32, i32, i32
  }
  func.func @transform_1(%arg0: i32) -> (i32, i32) {
    %c0_i32 = arith.constant 0 : i32
    %c0_i32_0 = arith.constant 0 : i32
    %c0_i32_1 = arith.constant 0 : i32
    return %c0_i32, %c0_i32_0 : i32, i32
  }
  func.func @transform_2(%arg0: i32) -> (i32, i32) {
    %c0_i32 = arith.constant 0 : i32
    %c0_i32_0 = arith.constant 0 : i32
    %c0_i32_1 = arith.constant 0 : i32
    return %c0_i32, %c0_i32_0 : i32, i32
  }
  func.func @transform_3(%arg0: i32) -> (i32, i32) {
    %c0_i32 = arith.constant 0 : i32
    %c0_i32_0 = arith.constant 0 : i32
    %c0_i32_1 = arith.constant 0 : i32
    return %c0_i32, %c0_i32_0 : i32, i32
  }
  func.func @transform_4(%arg0: i32) -> (i32, i32) {
    %c0_i32 = arith.constant 0 : i32
    %c0_i32_0 = arith.constant 0 : i32
    %c0_i32_1 = arith.constant 0 : i32
    return %c0_i32, %c0_i32_0 : i32, i32
  }
  func.func @transform_5(%arg0: i32) -> (i32, i32) {
    %c0_i32 = arith.constant 0 : i32
    %c0_i32_0 = arith.constant 0 : i32
    %c0_i32_1 = arith.constant 0 : i32
    return %c0_i32, %c0_i32_0 : i32, i32
  }
  func.func @transform_6(%arg0: i32) -> (i32, i32, i32) {
    %c0_i32 = arith.constant 0 : i32
    %c0_i32_0 = arith.constant 0 : i32
    %c0_i32_1 = arith.constant 0 : i32
    return %arg0, %c0_i32, %c0_i32_0 : i32, i32, i32
  }
}

</mosaic_0001>

<llo_original>
// kernel: tpu_custom_call.1
$region0: #{tpu_custom_call.1}
  #allocation0 [shape = 'u32[]', space=smem, size = 0x4, offset = 0x4, fixed_abs, tag = 'smem constant byte address 0x4 - core index']
  #allocation1 [shape = 'u32[144,128]{1,0:T(1,128)}', space=vmem, size = 0x12000, scoped, tag = 'internal scratch']
  #allocation2 [shape = 'f32[72,256]{1,0:T(8,128)}', space=vmem, size = 0x12000, scoped, tag = 'scratch operand']
  %s0 = inlined_call_operand.vmem [shape: f32[2,4,256], index: 0, kind: input, shape index: {}]
  %s1 = inlined_call_operand.vmem [shape: bf16[8,4], index: 1, kind: input, shape index: {}]
  %s2 = inlined_call_operand.vmem [shape: f32[8,1], index: 2, kind: input, shape index: {}]
  %s3 = inlined_call_operand.hbm [shape: bf16[32,72], index: 3, kind: input, shape index: {}]
  %s4 = inlined_call_operand.vmem [shape: f32[32,1], index: 4, kind: input, shape index: {}]
  %s5 = inlined_call_operand.vmem [shape: f32[9,256], index: 5, kind: input, shape index: {}]
  %s6 = inlined_call_operand.hbm [shape: f32[2,32,256], index: 6, kind: output, shape index: {}]
  %s7 = sld [smem:[#allocation0]]
  $region61: #{tpu_custom_call.1} parent=0
    _
  %s9 = ssub.s32 1, %s7
  %s10 = scalar_select 0, %s9, %s7
  $region1: #{tpu_custom_call.1} parent=0
    #allocation3 [shape = 'u8[8192]{0}', space=vmem, size = 0x2000, scoped, tag = 'input window, operand 3, single buffered']
    #allocation4 [shape = 's32[2]{0}', space=sflag, size = 0x8, scoped, tag = 'scoped memory for tpu_custom_call.1']
    #allocation5 [shape = 's32[2]{0}', space=sflag, size = 0x8, scoped, tag = 'scoped memory for tpu_custom_call.1']
    #allocation6 [shape = 'u8[65536]{0}', space=vmem, size = 0x10000, scoped, tag = 'output window, operand 0']
    %11 = vsyncpa [#allocation4], 0
    %12 = vsyncpa [#allocation5], 0
    %s13 = scalar_lea.sflag [#allocation5], 1
    %14 = vsyncpa %s13, 0
    loop: start=0, step=1, limit=4
    $region2: #{tpu_custom_call.1} parent=1 // loop_pre_header
      _
    $region3: #{tpu_custom_call.1} parent=1 // loop_header
      %s16 = sphi 0, %s20
      %p17 = scmp.ge.s32.totalorder %s16, 4
      %s26 = sphi 0, %s28
      %s29 = sphi 0, %s26
      %s30 = sphi 0, %s29
      %s46 = sphi 0, %s30
      %s50 = sphi 0, %s50
      %s52 = sphi 0, %s50
      %s53 = sphi 0, %s52
      %s67 = sphi 0, %s53
      %s71 = sphi 0, %s71
      %s73 = sphi 0, %s71
      %s74 = sphi 0, %s73
      %s88 = sphi 0, %s74
      %s92 = sphi 0, %s92
      %s94 = sphi 0, %s92
      %s95 = sphi 0, %s94
      %s109 = sphi 0, %s95
      %s113 = sphi 0, %s113
      %s115 = sphi 0, %s113
      %s116 = sphi 0, %s115
      %s130 = sphi 0, %s116
      %s134 = sphi 0, %s134
      %s136 = sphi 0, %s134
      %s137 = sphi 0, %s136
      %s151 = sphi 0, %s137
      %s157 = sphi 0, %s159
      %s160 = sphi 0, %s157
      %s161 = sphi 0, %s160
      %s177 = sphi 0, %s161
    $region4: #{tpu_custom_call.1} parent=1 // loop_header_branch
      %19 = sbr.rel (%p17) target = $region8
    $region5: #{tpu_custom_call.1} parent=1 // loop_body
      %s21 = ssub.s32 %s16, 1
      %s22 = ssub.s32 %s16, 2
      %s23 = sadd.s32 %s16, 1
      %s24 = ssub.s32 %s16, %s23
      %p25 = scmp.eq.s32.totalorder %s24, 0
      %s27 = sadd.s32 %s26, 1
      %s28 = scalar_select %p25, %s26, %s27
      %p31 = pneg %p25
      %p32 = scmp.eq.s32.totalorder %s16, 1
      %p33 = por %p31, %p32
      %p34 = scmp.ne.s32.totalorder %s26, %s29
      %p35 = scmp.eq.s32.totalorder %s16, 0
      %p36 = por %p34, %p35
      %p37 = scmp.ne.s32.totalorder %s26, %s29
      %p38 = scmp.eq.s32.totalorder %s21, 1
      %p39 = por %p37, %p38
      %p40 = scmp.ne.s32.totalorder %s29, %s30
      %p41 = scmp.eq.s32.totalorder %s21, 0
      %p42 = por %p40, %p41
      %p43 = scmp.ne.s32.totalorder %s29, %s30
      %p44 = scmp.eq.s32.totalorder %s22, 1
      %p45 = por %p43, %p44
      %p47 = scmp.ne.s32.totalorder %s30, %s46
      %p48 = scmp.eq.s32.totalorder %s22, 0
      %p49 = por %p47, %p48
      %s51 = sadd.s32 %s50, 1
      %p54 = scmp.eq.s32.totalorder %s16, 1
      %p55 = scmp.ne.s32.totalorder %s50, %s52
      %p56 = scmp.eq.s32.totalorder %s16, 0
      %p57 = por %p55, %p56
      %p58 = scmp.ne.s32.totalorder %s50, %s52
      %p59 = scmp.eq.s32.totalorder %s21, 1
      %p60 = por %p58, %p59
      %p61 = scmp.ne.s32.totalorder %s52, %s53
      %p62 = scmp.eq.s32.totalorder %s21, 0
      %p63 = por %p61, %p62
      %p64 = scmp.ne.s32.totalorder %s52, %s53
      %p65 = scmp.eq.s32.totalorder %s22, 1
      %p66 = por %p64, %p65
      %p68 = scmp.ne.s32.totalorder %s53, %s67
      %p69 = scmp.eq.s32.totalorder %s22, 0
      %p70 = por %p68, %p69
      %s72 = sadd.s32 %s71, 1
      %p75 = scmp.eq.s32.totalorder %s16, 1
      %p76 = scmp.ne.s32.totalorder %s71, %s73
      %p77 = scmp.eq.s32.totalorder %s16, 0
      %p78 = por %p76, %p77
      %p79 = scmp.ne.s32.totalorder %s71, %s73
      %p80 = scmp.eq.s32.totalorder %s21, 1
      %p81 = por %p79, %p80
      %p82 = scmp.ne.s32.totalorder %s73, %s74
      %p83 = scmp.eq.s32.totalorder %s21, 0
      %p84 = por %p82, %p83
      %p85 = scmp.ne.s32.totalorder %s73, %s74
      %p86 = scmp.eq.s32.totalorder %s22, 1
      %p87 = por %p85, %p86
      %p89 = scmp.ne.s32.totalorder %s74, %s88
      %p90 = scmp.eq.s32.totalorder %s22, 0
      %p91 = por %p89, %p90
      %s93 = sadd.s32 %s92, 1
      %p96 = scmp.eq.s32.totalorder %s16, 1
      %p97 = scmp.ne.s32.totalorder %s92, %s94
      %p98 = scmp.eq.s32.totalorder %s16, 0
      %p99 = por %p97, %p98
      %p100 = scmp.ne.s32.totalorder %s92, %s94
      %p101 = scmp.eq.s32.totalorder %s21, 1
      %p102 = por %p100, %p101
      %p103 = scmp.ne.s32.totalorder %s94, %s95
      %p104 = scmp.eq.s32.totalorder %s21, 0
      %p105 = por %p103, %p104
      %p106 = scmp.ne.s32.totalorder %s94, %s95
      %p107 = scmp.eq.s32.totalorder %s22, 1
      %p108 = por %p106, %p107
      %p110 = scmp.ne.s32.totalorder %s95, %s109
      %p111 = scmp.eq.s32.totalorder %s22, 0
      %p112 = por %p110, %p111
      %s114 = sadd.s32 %s113, 1
      %p117 = scmp.eq.s32.totalorder %s16, 1
      %p118 = scmp.ne.s32.totalorder %s113, %s115
      %p119 = scmp.eq.s32.totalorder %s16, 0
      %p120 = por %p118, %p119
      %p121 = scmp.ne.s32.totalorder %s113, %s115
      %p122 = scmp.eq.s32.totalorder %s21, 1
      %p123 = por %p121, %p122
      %p124 = scmp.ne.s32.totalorder %s115, %s116
      %p125 = scmp.eq.s32.totalorder %s21, 0
      %p126 = por %p124, %p125
      %p127 = scmp.ne.s32.totalorder %s115, %s116
      %p128 = scmp.eq.s32.totalorder %s22, 1
      %p129 = por %p127, %p128
      %p131 = scmp.ne.s32.totalorder %s116, %s130
      %p132 = scmp.eq.s32.totalorder %s22, 0
      %p133 = por %p131, %p132
      %s135 = sadd.s32 %s134, 1
      %p138 = scmp.eq.s32.totalorder %s16, 1
      %p139 = scmp.ne.s32.totalorder %s134, %s136
      %p140 = scmp.eq.s32.totalorder %s16, 0
      %p141 = por %p139, %p140
      %p142 = scmp.ne.s32.totalorder %s134, %s136
      %p143 = scmp.eq.s32.totalorder %s21, 1
      %p144 = por %p142, %p143
      %p145 = scmp.ne.s32.totalorder %s136, %s137
      %p146 = scmp.eq.s32.totalorder %s21, 0
      %p147 = por %p145, %p146
      %p148 = scmp.ne.s32.totalorder %s136, %s137
      %p149 = scmp.eq.s32.totalorder %s22, 1
      %p150 = por %p148, %p149
      %p152 = scmp.ne.s32.totalorder %s137, %s151
      %p153 = scmp.eq.s32.totalorder %s22, 0
      %p154 = por %p152, %p153
      %s155 = ssub.s32 %s16, %s23
      %p156 = scmp.eq.s32.totalorder %s155, 0
      %s158 = sadd.s32 %s157, 1
      %s159 = scalar_select %p156, %s157, %s158
      %p162 = pneg %p156
      %p163 = scmp.eq.s32.totalorder %s16, 1
      %p164 = por %p162, %p163
      %p165 = scmp.ne.s32.totalorder %s157, %s160
      %p166 = scmp.eq.s32.totalorder %s16, 0
      %p167 = por %p165, %p166
      %p168 = scmp.ne.s32.totalorder %s157, %s160
      %p169 = scmp.eq.s32.totalorder %s21, 1
      %p170 = por %p168, %p169
      %p171 = scmp.ne.s32.totalorder %s160, %s161
      %p172 = scmp.eq.s32.totalorder %s21, 0
      %p173 = por %p171, %p172
      %p174 = scmp.ne.s32.totalorder %s160, %s161
      %p175 = scmp.eq.s32.totalorder %s22, 1
      %p176 = por %p174, %p175
      %p178 = scmp.ne.s32.totalorder %s161, %s177
      %p179 = scmp.eq.s32.totalorder %s22, 0
      %p180 = por %p178, %p179
      %p181 = scmp.le.s32.totalorder 1, %s16
      %p182 = scmp.lt.s32.totalorder %s16, 3
      %p183 = pnand %p181, %p182
      %p184 = pneg %p183
      // Predicated region
      $region9: #{tpu_custom_call.1} parent=5 // pred_check
        _
      $region10: #{tpu_custom_call.1} parent=5 // pred_check_branch
        %186 = sbr.rel (%p183) target = $region12
      $region11: #{tpu_custom_call.1} parent=5 // pred_region
        %s187 = ssub.s32 %s16, 1
        // Predicated region
        $region13: #{tpu_custom_call.1} parent=11 // pred_check
          %p188 = pneg %p63
        $region14: #{tpu_custom_call.1} parent=11 // pred_check_branch
          %190 = sbr.rel (%p188) target = $region16
        $region15: #{tpu_custom_call.1} parent=11 // pred_region
          _
        $region16: #{tpu_custom_call.1} parent=11 // pred_fallthru
          _
        // Predicated region
        $region17: #{tpu_custom_call.1} parent=11 // pred_check
          %p191 = pneg %p84
        $region18: #{tpu_custom_call.1} parent=11 // pred_check_branch
          %193 = sbr.rel (%p191) target = $region20
        $region19: #{tpu_custom_call.1} parent=11 // pred_region
          _
        $region20: #{tpu_custom_call.1} parent=11 // pred_fallthru
          _
        // Predicated region
        $region21: #{tpu_custom_call.1} parent=11 // pred_check
          %p194 = pneg %p105
        $region22: #{tpu_custom_call.1} parent=11 // pred_check_branch
          %196 = sbr.rel (%p194) target = $region24
        $region23: #{tpu_custom_call.1} parent=11 // pred_region
          %s198 = ssub.s32 256, 256
          %199 = vsyncadd [#allocation4], %s198
          %s200 = sshll.u32 [#allocation3], 4
          %s201 = int_to_ptr.vmem [resolvable:$true] %s200
          %206 = dma.hbm_to_vmem [thread:$0]  %s3, 256, %s201, [#allocation4], 64, 64, 4
        $region24: #{tpu_custom_call.1} parent=11 // pred_fallthru
          _
        // Predicated region
        $region25: #{tpu_custom_call.1} parent=11 // pred_check
          %p207 = pneg %p126
        $region26: #{tpu_custom_call.1} parent=11 // pred_check_branch
          %209 = sbr.rel (%p207) target = $region28
        $region27: #{tpu_custom_call.1} parent=11 // pred_region
          _
        $region28: #{tpu_custom_call.1} parent=11 // pred_fallthru
          _
        // Predicated region
        $region29: #{tpu_custom_call.1} parent=11 // pred_check
          %p210 = pneg %p147
        $region30: #{tpu_custom_call.1} parent=11 // pred_check_branch
          %212 = sbr.rel (%p210) target = $region32
        $region31: #{tpu_custom_call.1} parent=11 // pred_region
          _
        $region32: #{tpu_custom_call.1} parent=11 // pred_fallthru
          _
      $region12: #{tpu_custom_call.1} parent=5 // pred_fallthru
        _
      %p213 = scmp.lt.s32.totalorder %s16, 2
      // Predicated region
      $region33: #{tpu_custom_call.1} parent=5 // pred_check
        %p214 = pneg %p213
      $region34: #{tpu_custom_call.1} parent=5 // pred_check_branch
        %216 = sbr.rel (%p214) target = $region36
      $region35: #{tpu_custom_call.1} parent=5 // pred_region
        // Predicated region
        $region37: #{tpu_custom_call.1} parent=35 // pred_check
          %p217 = pneg %p36
        $region38: #{tpu_custom_call.1} parent=35 // pred_check_branch
          %219 = sbr.rel (%p217) target = $region40
        $region39: #{tpu_custom_call.1} parent=35 // pred_region
          %p220 = scmp.lt.s32.totalorder %s16, 1
          %s221 = scalar_select %p220, %s16, 1
          %s222 = smul.addr %s221, 2
          %s223 = smul.addr %s222, 4
          %s224 = scalar_lea.vmem %s0, %s223
        $region40: #{tpu_custom_call.1} parent=35 // pred_fallthru
          _
      $region36: #{tpu_custom_call.1} parent=5 // pred_fallthru
        _
      %p225 = scmp.le.s32.totalorder 1, %s16
      %p226 = scmp.lt.s32.totalorder %s16, 3
      %p227 = pnand %p225, %p226
      %p228 = pneg %p227
      // Predicated region
      $region41: #{tpu_custom_call.1} parent=5 // pred_check
        _
      $region42: #{tpu_custom_call.1} parent=5 // pred_check_branch
        %230 = sbr.rel (%p227) target = $region44
      $region43: #{tpu_custom_call.1} parent=5 // pred_region
        %s231 = ssub.s32 %s16, 1
        // Predicated region
        $region45: #{tpu_custom_call.1} parent=43 // pred_check
          %p232 = pneg %p105
        $region46: #{tpu_custom_call.1} parent=43 // pred_check_branch
          %234 = sbr.rel (%p232) target = $region48
        $region47: #{tpu_custom_call.1} parent=43 // pred_region
          %235 = dma.done [#allocation4], 256
        $region48: #{tpu_custom_call.1} parent=43 // pred_fallthru
          _
        %p236 = scmp.lt.s32.totalorder %s21, 1
        %s237 = scalar_select %p236, %s21, 1
        %s238 = smul.addr %s237, 2
        %s239 = smul.addr %s238, 4
        %s240 = scalar_lea.vmem %s0, %s239
        %p241 = pneg %p42
        %p242 = pneg %p39
        %p243 = pneg %p63
        %p244 = pneg %p60
        %p245 = pneg %p84
        %p246 = pneg %p81
        %p247 = pneg %p105
        %p248 = pneg %p102
        %p249 = pneg %p126
        %p250 = pneg %p123
        %p251 = pneg %p147
        %p252 = pneg %p144
        %p253 = pneg %p173
        %p254 = pneg %p170
        %s255 = sand.u32 %s160, 1
        %s256 = scalar_lea.sflag [#allocation5], %s255
        %s257 = sand.u32 %s160, 1
        %s258 = smul.addr %s257, 64
        %s259 = scalar_lea.vmem [#allocation6], %s258
        %p260 = scmp.lt.s32.totalorder %s21, 1
        %s261 = scalar_select %p260, %s21, 1
        %s262 = smul.addr %s261, 2
        %s263 = smul.addr %s262, 4
        %s264 = scalar_lea.vmem %s0, %s263
        %v266 = vld [vmem:[%s264] sm:$0xff]
        %v268 = vcombine.high %v266, %v266
        %v270 = vpack.c.bf16 %v266, %v266
        %v271 = vpack.c.bf16 %v268, %v268
        %v272 = vld [vmem:[%s1] sm:$0xf]
        %v273 = vld [vmem:[%s2] sm:$0xff]
        %275 = vset.pattern.permute.xlu0 0
        %276 = vperm.xlu0 %275, %v273
        %v277 = vpop.permute.xlu0 %276
        %vm279 = vcmask 31744
        %v281 = vsel %vm279, %v272, 0
        %vm283 = vcmask 1041408
        %v285 = vsel %vm283, %v270, 0
        %v288 = vsel %vm283, %v271, 0
        %290 = vmatprep.subr.bf16.mxu0 %v288
        %291 = vmatpush1.bf16.msra.mxu0 %v285
        %292 = vmatprep.subr.bf16.mxu0 0
        %293 = vmatpush1.bf16.msra.mxu0 0
        %294 = vmatprep.subr.bf16.mxu0 0
        %295 = vmatpush1.bf16.msra.mxu0 0
        %296 = vmatprep.subr.bf16.mxu0 0
        %297 = vmatpush1.bf16.msra.mxu0 0
        %298 = vmatprep.subr.bf16.mxu0 0
        %299 = vmatpush1.bf16.msra.mxu0 0
        %300 = vmatprep.subr.bf16.mxu0 0
        %301 = vmatpush1.bf16.msra.mxu0 0
        %302 = vmatprep.subr.bf16.mxu0 0
        %303 = vmatpush1.bf16.msra.mxu0 0
        %304 = vmatprep.subr.bf16.mxu0 0
        %305 = vmatpush1.bf16.msra.mxu0 0
        %306 = vmatprep.subr.bf16.mxu0 0
        %307 = vmatpush1.bf16.msra.mxu0 0
        %308 = vmatprep.subr.bf16.mxu0 0
        %309 = vmatpush1.bf16.msra.mxu0 0
        %310 = vmatprep.subr.bf16.mxu0 0
        %311 = vmatpush1.bf16.msra.mxu0 0
        %312 = vmatprep.subr.bf16.mxu0 0
        %313 = vmatpush1.bf16.msra.mxu0 0
        %314 = vmatprep.subr.bf16.mxu0 0
        %315 = vmatpush1.bf16.msra.mxu0 0
        %316 = vmatprep.subr.bf16.mxu0 0
        %317 = vmatpush1.bf16.msra.mxu0 0
        %318 = vmatprep.subr.bf16.mxu0 0
        %319 = vmatpush1.bf16.msra.mxu0 0
        %320 = vmatprep.subr.bf16.mxu0 0
        %321 = vmatpush1.bf16.msra.mxu0 0
        %322 = vmatprep.mubr.bf16.mxu0 0
        %323 = vmatmul.mubr.bf16.gmra.mrb[0].mxu0 %v281
        %v324 = vpop.f32.mrb[0].mxu0
        %v325 = vadd.f32 %v277, %v324
        %v326 = vpop.f32.mrb[0].mxu0
        %v327 = vadd.f32 %v277, %v326
        %v328 = vpop.f32.mrb[0].mxu0
        %v329 = vpop.f32.mrb[0].mxu0
        %330 = vdwg.mxu0
        %v331 = vmax.f32 %v325, 0.0
        %v332 = vmax.f32 %v327, 0.0
        %v333 = vld [vmem:[%s5] sm:$0xff]
        %v334 = vld [vmem:[%s5 + $0x8] sm:$0xff]
        %v335 = vld [vmem:[%s5 + $0x10] sm:$0x1]
        %v336 = vld [vmem:[%s5 + $0x18] sm:$0x1]
        %337 = vrot.lane.b32.xlu0 %v331, 17
        %v338 = vpop.permute.xlu0 %337
        %339 = vrot.lane.b32.xlu0 %v332, 17
        %v340 = vpop.permute.xlu0 %339
        %v341 = vlaneseq
        %v342 = vand.u32 %v341, 127
        %vm343 = vcmp.lt.s32.totalorder %v342, 17
        %v344 = vsel %vm343, %v338, %v340
        %v345 = vsel %vm343, %v340, %v338
        %v346 = vlaneseq
        %v347 = vshrl.u32 %v346, 7
        %v348 = vsub.s32 0, %v347
        %v349 = vrot.slane %v333, %v348
        %v350 = vlaneseq
        %v351 = vshrl.u32 %v350, 7
        %v352 = vsub.s32 0, %v351
        %v353 = vrot.slane %v334, %v352
        %v354 = vmul.f32 %v345, %v349
        %v355 = vmul.f32 %v344, %v353
        %356 = vst [vmem:[#allocation2] sm:$0xff] %v354
        %357 = vst [vmem:[#allocation2 + $0x8] sm:$0xff] %v355
        %358 = vrot.lane.b32.xlu0 %v331, 16
        %v359 = vpop.permute.xlu0 %358
        %360 = vrot.lane.b32.xlu0 %v332, 16
        %v361 = vpop.permute.xlu0 %360
        %vm362 = vcmp.lt.s32.totalorder %v342, 16
        %v363 = vsel %vm362, %v359, %v361
        %v364 = vsel %vm362, %v361, %v359
        %v365 = vlaneseq
        %v366 = vshrl.u32 %v365, 7
        %v367 = vsub.s32 1, %v366
        %v368 = vrot.slane %v333, %v367
        %v369 = vlaneseq
        %v370 = vshrl.u32 %v369, 7
        %v371 = vsub.s32 1, %v370
        %v372 = vrot.slane %v334, %v371
        %v373 = vmul.f32 %v364, %v368
        %v374 = vmul.f32 %v363, %v372
        %375 = vst [vmem:[#allocation2 + $0x10] sm:$0xff] %v373
        %376 = vst [vmem:[#allocation2 + $0x18] sm:$0xff] %v374
        %377 = vrot.lane.b32.xlu0 %v331, 15
        %v378 = vpop.permute.xlu0 %377
        %379 = vrot.lane.b32.xlu0 %v332, 15
        %v380 = vpop.permute.xlu0 %379
        %vm381 = vcmp.lt.s32.totalorder %v342, 15
        %v382 = vsel %vm381, %v378, %v380
        %v383 = vsel %vm381, %v380, %v378
        %v384 = vlaneseq
        %v385 = vshrl.u32 %v384, 7
        %v386 = vsub.s32 2, %v385
        %v387 = vrot.slane %v333, %v386
        %v388 = vlaneseq
        %v389 = vshrl.u32 %v388, 7
        %v390 = vsub.s32 2, %v389
        %v391 = vrot.slane %v334, %v390
        %v392 = vmul.f32 %v383, %v387
        %v393 = vmul.f32 %v382, %v391
        %394 = vst [vmem:[#allocation2 + $0x20] sm:$0xff] %v392
        %395 = vst [vmem:[#allocation2 + $0x28] sm:$0xff] %v393
        %396 = vrot.lane.b32.xlu0 %v331, 1
        %v397 = vpop.permute.xlu0 %396
        %398 = vrot.lane.b32.xlu0 %v332, 1
        %v399 = vpop.permute.xlu0 %398
        %vm400 = vcmp.lt.s32.totalorder %v342, 1
        %v401 = vsel %vm400, %v397, %v399
        %v402 = vsel %vm400, %v399, %v397
        %v403 = vlaneseq
        %v404 = vshrl.u32 %v403, 7
        %v405 = vsub.s32 3, %v404
        %v406 = vrot.slane %v333, %v405
        %v407 = vlaneseq
        %v408 = vshrl.u32 %v407, 7
        %v409 = vsub.s32 3, %v408
        %v410 = vrot.slane %v334, %v409
        %v411 = vmul.f32 %v402, %v406
        %v412 = vmul.f32 %v401, %v410
        %413 = vst [vmem:[#allocation2 + $0x30] sm:$0xff] %v411
        %414 = vst [vmem:[#allocation2 + $0x38] sm:$0xff] %v412
        %415 = vst [vmem:[#allocation2 + $0x40] sm:$0xff] %v331
        %416 = vst [vmem:[#allocation2 + $0x48] sm:$0xff] %v332
        %417 = vrot.lane.b32.xlu0 %v331, 127
        %v418 = vpop.permute.xlu0 %417
        %419 = vrot.lane.b32.xlu0 %v332, 127
        %v420 = vpop.permute.xlu0 %419
        %vm421 = vcmp.lt.s32.totalorder %v342, 127
        %v422 = vsel %vm421, %v418, %v420
        %v423 = vsel %vm421, %v420, %v418
        %v424 = vlaneseq
        %v425 = vshrl.u32 %v424, 7
        %v426 = vsub.s32 5, %v425
        %v427 = vrot.slane %v333, %v426
        %v428 = vlaneseq
        %v429 = vshrl.u32 %v428, 7
        %v430 = vsub.s32 5, %v429
        %v431 = vrot.slane %v334, %v430
        %v432 = vmul.f32 %v422, %v427
        %v433 = vmul.f32 %v423, %v431
        %434 = vst [vmem:[#allocation2 + $0x50] sm:$0xff] %v432
        %435 = vst [vmem:[#allocation2 + $0x58] sm:$0xff] %v433
        %436 = vrot.lane.b32.xlu0 %v331, 113
        %v437 = vpop.permute.xlu0 %436
        %438 = vrot.lane.b32.xlu0 %v332, 113
        %v439 = vpop.permute.xlu0 %438
        %vm440 = vcmp.lt.s32.totalorder %v342, 113
        %v441 = vsel %vm440, %v437, %v439
        %v442 = vsel %vm440, %v439, %v437
        %v443 = vlaneseq
        %v444 = vshrl.u32 %v443, 7
        %v445 = vsub.s32 6, %v444
        %v446 = vrot.slane %v333, %v445
        %v447 = vlaneseq
        %v448 = vshrl.u32 %v447, 7
        %v449 = vsub.s32 6, %v448
        %v450 = vrot.slane %v334, %v449
        %v451 = vmul.f32 %v441, %v446
        %v452 = vmul.f32 %v442, %v450
        %453 = vst [vmem:[#allocation2 + $0x60] sm:$0xff] %v451
        %454 = vst [vmem:[#allocation2 + $0x68] sm:$0xff] %v452
        %455 = vrot.lane.b32.xlu0 %v331, 112
        %v456 = vpop.permute.xlu0 %455
        %457 = vrot.lane.b32.xlu0 %v332, 112
        %v458 = vpop.permute.xlu0 %457
        %vm459 = vcmp.lt.s32.totalorder %v342, 112
        %v460 = vsel %vm459, %v456, %v458
        %v461 = vsel %vm459, %v458, %v456
        %v462 = vlaneseq
        %v463 = vshrl.u32 %v462, 7
        %v464 = vsub.s32 7, %v463
        %v465 = vrot.slane %v333, %v464
        %v466 = vlaneseq
        %v467 = vshrl.u32 %v466, 7
        %v468 = vsub.s32 7, %v467
        %v469 = vrot.slane %v334, %v468
        %v470 = vmul.f32 %v460, %v465
        %v471 = vmul.f32 %v461, %v469
        %472 = vst [vmem:[#allocation2 + $0x70] sm:$0xff] %v470
        %473 = vst [vmem:[#allocation2 + $0x78] sm:$0xff] %v471
        %474 = vrot.lane.b32.xlu0 %v331, 111
        %v475 = vpop.permute.xlu0 %474
        %476 = vrot.lane.b32.xlu0 %v332, 111
        %v477 = vpop.permute.xlu0 %476
        %vm478 = vcmp.lt.s32.totalorder %v342, 111
        %v479 = vsel %vm478, %v475, %v477
        %v480 = vsel %vm478, %v477, %v475
        %v481 = vlaneseq
        %v482 = vshrl.u32 %v481, 7
        %v483 = vsub.s32 0, %v482
        %v484 = vrot.slane %v335, %v483
        %v485 = vlaneseq
        %v486 = vshrl.u32 %v485, 7
        %v487 = vsub.s32 0, %v486
        %v488 = vrot.slane %v336, %v487
        %v489 = vmul.f32 %v479, %v484
        %v490 = vmul.f32 %v480, %v488
        %491 = vst [vmem:[#allocation2 + $0x80] sm:$0xff] %v489
        %492 = vst [vmem:[#allocation2 + $0x88] sm:$0xff] %v490
        %v493 = vld [vmem:[#allocation3] sm:$0xf]
        %v494 = vld [vmem:[#allocation3 + $0x4] sm:$0xf]
        %v495 = vld [vmem:[#allocation3 + $0x8] sm:$0xf]
        %v496 = vld [vmem:[#allocation3 + $0xc] sm:$0xf]
        %v497 = vld [vmem:[#allocation2] sm:$0xff]
        %v498 = vld [vmem:[#allocation2 + $0x8] sm:$0xff]
        %v499 = vld [vmem:[#allocation2 + $0x10] sm:$0xff]
        %v500 = vld [vmem:[#allocation2 + $0x18] sm:$0xff]
        %v501 = vld [vmem:[#allocation2 + $0x20] sm:$0xff]
        %v502 = vld [vmem:[#allocation2 + $0x28] sm:$0xff]
        %v503 = vld [vmem:[#allocation2 + $0x30] sm:$0xff]
        %v504 = vld [vmem:[#allocation2 + $0x38] sm:$0xff]
        %v505 = vld [vmem:[#allocation2 + $0x40] sm:$0xff]
        %v506 = vld [vmem:[#allocation2 + $0x48] sm:$0xff]
        %v507 = vld [vmem:[#allocation2 + $0x50] sm:$0xff]
        %v508 = vld [vmem:[#allocation2 + $0x58] sm:$0xff]
        %v509 = vld [vmem:[#allocation2 + $0x60] sm:$0xff]
        %v510 = vld [vmem:[#allocation2 + $0x68] sm:$0xff]
        %v511 = vld [vmem:[#allocation2 + $0x70] sm:$0xff]
        %v512 = vld [vmem:[#allocation2 + $0x78] sm:$0xff]
        %v513 = vld [vmem:[#allocation2 + $0x80] sm:$0xff]
        %v514 = vld [vmem:[#allocation2 + $0x88] sm:$0xff]
        %v515 = vpack.c.bf16 %v499, %v497
        %v516 = vpack.c.bf16 %v500, %v498
        %v517 = vpack.c.bf16 %v503, %v501
        %v518 = vpack.c.bf16 %v504, %v502
        %v519 = vpack.c.bf16 %v507, %v505
        %v520 = vpack.c.bf16 %v508, %v506
        %v521 = vpack.c.bf16 %v511, %v509
        %v522 = vpack.c.bf16 %v512, %v510
        %v523 = vpack.c.bf16 %v513, %v513
        %v524 = vpack.c.bf16 %v514, %v514
        %v525 = vld [vmem:[%s4] sm:$0xff]
        %v526 = vld [vmem:[%s4 + $0x8] sm:$0xff]
        %v527 = vld [vmem:[%s4 + $0x10] sm:$0xff]
        %v528 = vld [vmem:[%s4 + $0x18] sm:$0xff]
        %530 = vset.pattern.permute.xlu0 0
        %531 = vperm.xlu0 %530, %v525
        %v532 = vpop.permute.xlu0 %531
        %535 = vset.pattern.permute.xlu0 0
        %536 = vperm.xlu0 %535, %v526
        %v537 = vpop.permute.xlu0 %536
        %540 = vset.pattern.permute.xlu0 0
        %541 = vperm.xlu0 %540, %v527
        %v542 = vpop.permute.xlu0 %541
        %545 = vset.pattern.permute.xlu0 0
        %546 = vperm.xlu0 %545, %v528
        %v547 = vpop.permute.xlu0 %546
        %v553 = vunpack.c.l.b16 %v493
        %v554 = vunpack.c.l.b16 %v494
        %v555 = vunpack.c.l.b16 %v495
        %v556 = vunpack.c.l.b16 %v496
        %v557 = vpack.c.b16 %v554, %v553
        %v558 = vpack.c.b16 %v556, %v555
        %vm559 = vcmask 588800
        %v561 = vsel %vm559, %v557, 0
        %v564 = vsel %vm559, %v558, 0
        %vm566 = vcmask 1043456
        %v568 = vsel %vm566, %v523, 0
        %v571 = vsel %vm566, %v524, 0
        %573 = vmatprep.subr.bf16.mxu0 %v516
        %574 = vmatpush1.bf16.msra.mxu0 %v515
        %575 = vmatprep.subr.bf16.mxu0 %v518
        %576 = vmatpush1.bf16.msra.mxu0 %v517
        %577 = vmatprep.subr.bf16.mxu0 %v520
        %578 = vmatpush1.bf16.msra.mxu0 %v519
        %579 = vmatprep.subr.bf16.mxu0 %v522
        %580 = vmatpush1.bf16.msra.mxu0 %v521
        %581 = vmatprep.subr.bf16.mxu0 %v571
        %582 = vmatpush1.bf16.msra.mxu0 %v568
        %583 = vmatprep.subr.bf16.mxu0 0
        %584 = vmatpush1.bf16.msra.mxu0 0
        %585 = vmatprep.subr.bf16.mxu0 0
        %586 = vmatpush1.bf16.msra.mxu0 0
        %587 = vmatprep.subr.bf16.mxu0 0
        %588 = vmatpush1.bf16.msra.mxu0 0
        %589 = vmatprep.subr.bf16.mxu0 0
        %590 = vmatpush1.bf16.msra.mxu0 0
        %591 = vmatprep.subr.bf16.mxu0 0
        %592 = vmatpush1.bf16.msra.mxu0 0
        %593 = vmatprep.subr.bf16.mxu0 0
        %594 = vmatpush1.bf16.msra.mxu0 0
        %595 = vmatprep.subr.bf16.mxu0 0
        %596 = vmatpush1.bf16.msra.mxu0 0
        %597 = vmatprep.subr.bf16.mxu0 0
        %598 = vmatpush1.bf16.msra.mxu0 0
        %599 = vmatprep.subr.bf16.mxu0 0
        %600 = vmatpush1.bf16.msra.mxu0 0
        %601 = vmatprep.subr.bf16.mxu0 0
        %602 = vmatpush1.bf16.msra.mxu0 0
        %603 = vmatprep.subr.bf16.mxu0 0
        %604 = vmatpush1.bf16.msra.mxu0 0
        %605 = vmatprep.mubr.bf16.mxu0 0
        %606 = vmatmul.mubr.bf16.gmra.mrb[0].mxu0 %v561
        %v607 = vpop.f32.mrb[0].mxu0
        %v608 = vadd.f32 %v532, %v607
        %v609 = vpop.f32.mrb[0].mxu0
        %v610 = vadd.f32 %v532, %v609
        %v611 = vpop.f32.mrb[0].mxu0
        %v612 = vadd.f32 %v537, %v611
        %v613 = vpop.f32.mrb[0].mxu0
        %v614 = vadd.f32 %v537, %v613
        %615 = vmatprep.mubr.bf16.mxu0 0
        %616 = vmatmul.mubr.bf16.gmra.mrb[0].mxu0 %v564
        %v617 = vpop.f32.mrb[0].mxu0
        %v618 = vadd.f32 %v542, %v617
        %v619 = vpop.f32.mrb[0].mxu0
        %v620 = vadd.f32 %v542, %v619
        %v621 = vpop.f32.mrb[0].mxu0
        %v622 = vadd.f32 %v547, %v621
        %v623 = vpop.f32.mrb[0].mxu0
        %v624 = vadd.f32 %v547, %v623
        %625 = vdwg.mxu0
        %v626 = vmax.f32 %v608, 0.0
        %v627 = vmax.f32 %v610, 0.0
        %v628 = vmax.f32 %v612, 0.0
        %v629 = vmax.f32 %v614, 0.0
        %v630 = vmax.f32 %v618, 0.0
        %v631 = vmax.f32 %v620, 0.0
        %v632 = vmax.f32 %v622, 0.0
        %v633 = vmax.f32 %v624, 0.0
        %634 = vst [vmem:[%s259] sm:$0xff] %v626
        %635 = vst [vmem:[%s259 + $0x8] sm:$0xff] %v627
        %636 = vst [vmem:[%s259 + $0x10] sm:$0xff] %v628
        %637 = vst [vmem:[%s259 + $0x18] sm:$0xff] %v629
        %638 = vst [vmem:[%s259 + $0x20] sm:$0xff] %v630
        %639 = vst [vmem:[%s259 + $0x28] sm:$0xff] %v631
        %640 = vst [vmem:[%s259 + $0x30] sm:$0xff] %v632
        %641 = vst [vmem:[%s259 + $0x38] sm:$0xff] %v633
        %s642 = sand.u32 %s160, 1
        %s643 = scalar_lea.sflag [#allocation5], %s642
        %s644 = sand.u32 %s160, 1
        %s645 = smul.addr %s644, 64
        %s646 = scalar_lea.vmem [#allocation6], %s645
        // Predicated region
        $region49: #{tpu_custom_call.1} parent=43 // pred_check
          %p647 = pneg %p170
        $region50: #{tpu_custom_call.1} parent=43 // pred_check_branch
          %649 = sbr.rel (%p647) target = $region52
        $region51: #{tpu_custom_call.1} parent=43 // pred_region
          %s651 = ssub.s32 1024, 1024
          %652 = vsyncadd %s643, %s651
          %s653 = smul.addr %s21, 8
          %s654 = smul.addr %s653, 128
          %s655 = scalar_lea.hbm %s6, %s654
          %s656 = sshll.u32 %s646, 4
          %s657 = int_to_ptr.vmem [resolvable:$true] %s656
          %662 = dma.vmem_to_hbm [thread:$0]  %s657, 1024, %s655, %s643, 256, 256, 16
        $region52: #{tpu_custom_call.1} parent=43 // pred_fallthru
          _
      $region44: #{tpu_custom_call.1} parent=5 // pred_fallthru
        _
      %p663 = scmp.le.s32.totalorder 2, %s16
      // Predicated region
      $region53: #{tpu_custom_call.1} parent=5 // pred_check
        %p664 = pneg %p663
      $region54: #{tpu_custom_call.1} parent=5 // pred_check_branch
        %666 = sbr.rel (%p664) target = $region56
      $region55: #{tpu_custom_call.1} parent=5 // pred_region
        %s667 = ssub.s32 %s16, 2
        // Predicated region
        $region57: #{tpu_custom_call.1} parent=55 // pred_check
          %p668 = pneg %p176
        $region58: #{tpu_custom_call.1} parent=55 // pred_check_branch
          %670 = sbr.rel (%p668) target = $region60
        $region59: #{tpu_custom_call.1} parent=55 // pred_region
          %s671 = sand.u32 %s161, 1
          %s672 = scalar_lea.sflag [#allocation5], %s671
          %s673 = sand.u32 %s161, 1
          %s674 = smul.addr %s673, 64
          %s675 = scalar_lea.vmem [#allocation6], %s674
          %676 = dma.done %s672, 1024
        $region60: #{tpu_custom_call.1} parent=55 // pred_fallthru
          _
      $region56: #{tpu_custom_call.1} parent=5 // pred_fallthru
        _
    $region6: #{tpu_custom_call.1} parent=1 // loop_footer
      %s20 = sadd.s32 1, %s16
    $region7: #{tpu_custom_call.1} parent=1 // loop_footer_branch
      %15 = sbr.rel target = $region3
    $region8: #{tpu_custom_call.1} parent=1 // loop_exit
      _
    %677 = vsyncpa [#allocation4], 1
    %s678 = scalar_lea.sflag [#allocation4], 1
    %679 = vsyncpa %s678, 1
    %680 = vsyncpa [#allocation5], 1
    %s681 = scalar_lea.sflag [#allocation5], 1
    %682 = vsyncpa %s681, 1

</llo_original>
